<compile_context>
chip_gen: v7x
topology: tpu7x:2x2x1
jax: 0.10.0
libtpu: 0.0.40
codegen_flags: <defaults>
</compile_context>

<pallas_src>
import jax
import jax.numpy as jnp
from jax import lax
from jax.experimental import pallas as pl
from jax.experimental.pallas import tpu as pltpu


def residual_block_kernel(xf_ref, w1c_ref, b1c_ref, w2b_ref, b2r_ref,
                          out_ref, mid_ref):
    Nb, Hp, K1 = xf_ref.shape            # xf: (Nb, H+2, Wp*Cin)
    H = Hp - 2
    WCmid = mid_ref.shape[2]             # W*Cmid (lane-dense, 128 here)
    M = Nb * H

    # ---- conv1 (+ fused 1x1 shortcut): 3 banded matmuls over dh ------------
    # RHS columns = [W*Cmid conv1 outputs | W*Cout shortcut outputs].
    acc1 = jnp.dot(xf_ref[:, 0:H, :].reshape(M, K1), w1c_ref[0],
                   preferred_element_type=jnp.float32)
    for dh in (1, 2):
        rows = xf_ref[:, dh:dh + H, :].reshape(M, K1)
        acc1 = acc1 + jnp.dot(rows, w1c_ref[dh],
                              preferred_element_type=jnp.float32)
    acc1 = acc1 + b1c_ref[...]                       # [b1 | bb], tiled over w
    a1 = jnp.maximum(acc1[:, :WCmid], 0.0)           # ReLU path      (M, W*Cmid)
    shortcut = acc1[:, WCmid:]                       # 1x1 projection (M, W*Cout)

    # ---- h-padded intermediate (lane-dense): zero the 2 halo rows per step,
    #      then overwrite the interior (w-padding is baked into the band).
    zero_row = jnp.zeros((Nb, 1, WCmid), jnp.float32)
    mid_ref[:, 0:1, :] = zero_row
    mid_ref[:, Hp - 1:Hp, :] = zero_row
    mid_ref[:, 1:1 + H, :] = a1.reshape(Nb, H, WCmid)

    # ---- conv2: 3 banded matmuls over dh -----------------------------------
    acc2 = jnp.dot(mid_ref[:, 0:H, :].reshape(M, WCmid), w2b_ref[0],
                   preferred_element_type=jnp.float32)
    for dh in (1, 2):
        rows = mid_ref[:, dh:dh + H, :].reshape(M, WCmid)
        acc2 = acc2 + jnp.dot(rows, w2b_ref[dh],
                              preferred_element_type=jnp.float32)

    # ---- residual add + lane-dense store ------------------------------------
    out = acc2 + b2r_ref[...] + shortcut             # (M, W*Cout)
    out_ref[...] = out.reshape(out_ref.shape)        # (Nb, H, W*Cout)


def _pick_batch_block(n, max_nb=8):
    """Largest divisor of n that is <= max_nb while keeping >= 2 grid steps."""
    best = 1
    for nb in range(1, min(max_nb, n) + 1):
        if n % nb == 0 and (n // nb >= 2 or n == 1):
            best = nb
    return best


def residual_block(x_nhwc, w1, b1, w2, b2, wb, bb, *, max_batch_block=8):
    """x_nhwc: (N,H,W,Cin) f32; w1:(3,3,Cin,Cmid), w2:(3,3,Cmid,Cout), wb:(1,1,Cin,Cout)."""
    f32 = jnp.float32
    N, H, W, Cin = x_nhwc.shape
    Cmid = w1.shape[-1]
    Cout = w2.shape[-1]
    Hp, Wp = H + 2, W + 2
    nb = _pick_batch_block(N, max_batch_block)

    # --- glue (plain JAX): spatial pad + lane-flatten the input --------------
    xpad = jnp.pad(x_nhwc, ((0, 0), (1, 1), (1, 1), (0, 0))).astype(f32)
    xflat = xpad.reshape(N, Hp, Wp * Cin)

    # --- banded weights: fold the w-direction of each 3x3 conv into the RHS.
    # S1[dw, wi, wo] = 1 iff wi == wo + dw     (padded input coords)
    # S2[dw, wi, wo] = 1 iff wi == wo + dw - 1 (unpadded input, SAME pad baked in)
    dw = jnp.arange(3)[:, None, None]
    wo = jnp.arange(W)[None, None, :]
    S1 = (jnp.arange(Wp)[None, :, None] == wo + dw).astype(f32)       # (3, Wp, W)
    S2 = (jnp.arange(W)[None, :, None] == wo + dw - 1).astype(f32)    # (3, W, W)

    B1 = jnp.einsum('dpw,hdio->hpiwo', S1, w1).reshape(3, Wp * Cin, W * Cmid)
    wsc = jnp.zeros((3, Cin, Cout), f32).at[1].set(wb.reshape(Cin, Cout))
    Bsc = jnp.einsum('dpw,dio->piwo', S1, wsc).reshape(Wp * Cin, W * Cout)
    Bsc = jnp.zeros((3, Wp * Cin, W * Cout), f32).at[1].set(Bsc)
    B1cat = jnp.concatenate([B1, Bsc], axis=-1)     # (3, Wp*Cin, W*(Cmid+Cout))
    B2 = jnp.einsum('dpw,hdio->hpiwo', S2, w2).reshape(3, W * Cmid, W * Cout)

    b1cat = jnp.concatenate([jnp.tile(b1.reshape(1, Cmid), (1, W)),
                             jnp.tile(bb.reshape(1, Cout), (1, W))], axis=-1)
    b2row = jnp.tile(b2.reshape(1, Cout), (1, W))
    Ncat = W * (Cmid + Cout)

    grid_spec = pltpu.PrefetchScalarGridSpec(
        num_scalar_prefetch=0,
        grid=(N // nb,),                             # nb images per grid step
        in_specs=[
            pl.BlockSpec((nb, Hp, Wp * Cin), lambda n: (n, 0, 0)),
            pl.BlockSpec((3, Wp * Cin, Ncat), lambda n: (0, 0, 0)),
            pl.BlockSpec((1, Ncat), lambda n: (0, 0)),
            pl.BlockSpec((3, W * Cmid, W * Cout), lambda n: (0, 0, 0)),
            pl.BlockSpec((1, W * Cout), lambda n: (0, 0)),
        ],
        out_specs=pl.BlockSpec((nb, H, W * Cout), lambda n: (n, 0, 0)),
        scratch_shapes=[pltpu.VMEM((nb, Hp, W * Cmid), f32)],
    )

    flops = 2 * N * H * W * (9 * Cin * Cmid + 9 * Cmid * Cout + Cin * Cout)
    bytes_accessed = 4 * int(xflat.size + B1cat.size + b1cat.size + B2.size
                             + b2row.size + N * H * W * Cout)

    out_flat = pl.pallas_call(
        residual_block_kernel,
        out_shape=jax.ShapeDtypeStruct((N, H, W * Cout), f32),
        grid_spec=grid_spec,
        compiler_params=pltpu.CompilerParams(
            dimension_semantics=("parallel",),       # megacore-shard batch steps
            vmem_limit_bytes=32 * 1024 * 1024),      # safe on v7x's 64 MiB part
        cost_estimate=pl.CostEstimate(flops=flops, transcendentals=0,
                                      bytes_accessed=bytes_accessed),
    )(xflat, B1cat, b1cat, B2, b2row)

    return out_flat.reshape(N, H, W, Cout)


def reference(x_nhwc, w1, b1, w2, b2, wb, bb):
    dn = ('NHWC', 'HWIO', 'NHWC')
    a = lax.conv_general_dilated(x_nhwc, w1, (1, 1), 'SAME', dimension_numbers=dn) + b1
    a = jnp.maximum(a, 0.0)
    a = lax.conv_general_dilated(a, w2, (1, 1), 'SAME', dimension_numbers=dn) + b2
    b = lax.conv_general_dilated(x_nhwc, wb, (1, 1), 'SAME', dimension_numbers=dn) + bb
    return a + b


if __name__ == "__main__":
    N, Cin, H, W = 2, 4, 16, 16
    Cmid, Cout = 8, 4

    key = jax.random.PRNGKey(0)
    kx, k1, k2, k3, k4, k5, k6 = jax.random.split(key, 7)

    x_nchw = jax.random.normal(kx, (N, Cin, H, W), jnp.float32)   # PyTorch layout
    x_nhwc = jnp.transpose(x_nchw, (0, 2, 3, 1))                  # kernel layout

    # deterministic parameter init (HWIO conv weights)
    w1 = jax.random.normal(k1, (3, 3, Cin, Cmid), jnp.float32) * 0.1
    b1 = jax.random.normal(k2, (Cmid,), jnp.float32) * 0.1
    w2 = jax.random.normal(k3, (3, 3, Cmid, Cout), jnp.float32) * 0.1
    b2 = jax.random.normal(k4, (Cout,), jnp.float32) * 0.1
    wb = jax.random.normal(k5, (1, 1, Cin, Cout), jnp.float32) * 0.1
    bb = jax.random.normal(k6, (Cout,), jnp.float32) * 0.1

    out = jax.block_until_ready(residual_block(x_nhwc, w1, b1, w2, b2, wb, bb))
    ref = reference(x_nhwc, w1, b1, w2, b2, wb, bb)
    if not jnp.allclose(out, ref, atol=1e-4, rtol=1e-4):
        err = float(jnp.max(jnp.abs(out - ref)))
        raise AssertionError(f"Pallas ResidualBlock mismatch vs reference (max err {err})")

    print("KERNEL_OK")
</pallas_src>

<mosaic_0001>
module attributes {stable_mosaic.version = 11 : i64} {
  func.func @residual_block_kernel(%arg0: i32, %arg1: memref<1x18x72xf32, #tpu.memory_space<vmem>>, %arg2: memref<3x72x192xf32, #tpu.memory_space<vmem>>, %arg3: memref<1x192xf32, #tpu.memory_space<vmem>>, %arg4: memref<3x128x64xf32, #tpu.memory_space<vmem>>, %arg5: memref<1x64xf32, #tpu.memory_space<vmem>>, %arg6: memref<1x16x64xf32, #tpu.memory_space<vmem>>, %arg7: memref<1x18x128xf32, #tpu.memory_space<vmem>>) attributes {dimension_semantics = [#tpu.dimension_semantics<parallel>], iteration_bounds = array<i64: 2>, scalar_prefetch = 0 : i64, scratch_operands = 1 : i64, tpu.core_type = #tpu.core_type<tc>, window_params = [{transform_indices = @transform_0, window_bounds = array<i64: 1, 18, 72>}, {pipeline_mode = #tpu.pipeline_mode<synchronous>, transform_indices = @transform_1, window_bounds = array<i64: 3, 72, 192>}, {pipeline_mode = #tpu.pipeline_mode<synchronous>, transform_indices = @transform_2, window_bounds = array<i64: 1, 192>}, {pipeline_mode = #tpu.pipeline_mode<synchronous>, transform_indices = @transform_3, window_bounds = array<i64: 3, 128, 64>}, {pipeline_mode = #tpu.pipeline_mode<synchronous>, transform_indices = @transform_4, window_bounds = array<i64: 1, 64>}, {transform_indices = @transform_5, window_bounds = array<i64: 1, 16, 64>}]} {
    %c0 = arith.constant 0 : index
    %c0_0 = arith.constant 0 : index
    %c0_1 = arith.constant 0 : index
    %0 = vector.load %arg1[%c0, %c0_0, %c0_1] : memref<1x18x72xf32, #tpu.memory_space<vmem>>, vector<1x16x72xf32>
    %1 = vector.shape_cast %0 : vector<1x16x72xf32> to vector<16x72xf32>
    %c0_2 = arith.constant 0 : index
    %c0_3 = arith.constant 0 : index
    %c0_4 = arith.constant 0 : index
    %2 = vector.load %arg2[%c0_2, %c0_3, %c0_4] : memref<3x72x192xf32, #tpu.memory_space<vmem>>, vector<1x72x192xf32>
    %3 = vector.shape_cast %2 : vector<1x72x192xf32> to vector<72x192xf32>
    %cst = arith.constant dense<0.000000e+00> : vector<16x192xf32>
    %4 = tpu.matmul %1, %3, %cst {dimension_numbers = #tpu.dot_dimension_numbers<[1], [0], [0], [1], [0, 0, 1, 1], [], []>} : vector<16x72xf32>, vector<72x192xf32>, vector<16x192xf32> -> vector<16x192xf32>
    %c0_5 = arith.constant 0 : index
    %c1 = arith.constant 1 : index
    %c0_6 = arith.constant 0 : index
    %5 = vector.load %arg1[%c0_5, %c1, %c0_6] : memref<1x18x72xf32, #tpu.memory_space<vmem>>, vector<1x16x72xf32>
    %6 = vector.shape_cast %5 : vector<1x16x72xf32> to vector<16x72xf32>
    %c1_7 = arith.constant 1 : index
    %c0_8 = arith.constant 0 : index
    %c0_9 = arith.constant 0 : index
    %7 = vector.load %arg2[%c1_7, %c0_8, %c0_9] : memref<3x72x192xf32, #tpu.memory_space<vmem>>, vector<1x72x192xf32>
    %8 = vector.shape_cast %7 : vector<1x72x192xf32> to vector<72x192xf32>
    %cst_10 = arith.constant dense<0.000000e+00> : vector<16x192xf32>
    %9 = tpu.matmul %6, %8, %cst_10 {dimension_numbers = #tpu.dot_dimension_numbers<[1], [0], [0], [1], [0, 0, 1, 1], [], []>} : vector<16x72xf32>, vector<72x192xf32>, vector<16x192xf32> -> vector<16x192xf32>
    %10 = arith.addf %4, %9 : vector<16x192xf32>
    %c0_11 = arith.constant 0 : index
    %c2 = arith.constant 2 : index
    %c0_12 = arith.constant 0 : index
    %11 = vector.load %arg1[%c0_11, %c2, %c0_12] : memref<1x18x72xf32, #tpu.memory_space<vmem>>, vector<1x16x72xf32>
    %12 = vector.shape_cast %11 : vector<1x16x72xf32> to vector<16x72xf32>
    %c2_13 = arith.constant 2 : index
    %c0_14 = arith.constant 0 : index
    %c0_15 = arith.constant 0 : index
    %13 = vector.load %arg2[%c2_13, %c0_14, %c0_15] : memref<3x72x192xf32, #tpu.memory_space<vmem>>, vector<1x72x192xf32>
    %14 = vector.shape_cast %13 : vector<1x72x192xf32> to vector<72x192xf32>
    %cst_16 = arith.constant dense<0.000000e+00> : vector<16x192xf32>
    %15 = tpu.matmul %12, %14, %cst_16 {dimension_numbers = #tpu.dot_dimension_numbers<[1], [0], [0], [1], [0, 0, 1, 1], [], []>} : vector<16x72xf32>, vector<72x192xf32>, vector<16x192xf32> -> vector<16x192xf32>
    %16 = arith.addf %10, %15 : vector<16x192xf32>
    %c0_17 = arith.constant 0 : index
    %c0_18 = arith.constant 0 : index
    %17 = vector.load %arg3[%c0_17, %c0_18] : memref<1x192xf32, #tpu.memory_space<vmem>>, vector<1x192xf32>
    %18 = vector.broadcast %17 : vector<1x192xf32> to vector<16x192xf32>
    %19 = arith.addf %16, %18 : vector<16x192xf32>
    %20 = vector.extract_strided_slice %19 {offsets = [0, 0], sizes = [16, 128], strides = [1, 1]} : vector<16x192xf32> to vector<16x128xf32>
    %cst_19 = arith.constant 0.000000e+00 : f32
    %21 = vector.broadcast %cst_19 : f32 to vector<16x128xf32>
    %22 = arith.maximumf %20, %21 : vector<16x128xf32>
    %23 = vector.extract_strided_slice %19 {offsets = [0, 128], sizes = [16, 64], strides = [1, 1]} : vector<16x192xf32> to vector<16x64xf32>
    %cst_20 = arith.constant 0.000000e+00 : f32
    %24 = vector.broadcast %cst_20 : f32 to vector<1x1x128xf32>
    %c0_21 = arith.constant 0 : index
    %c0_22 = arith.constant 0 : index
    %c0_23 = arith.constant 0 : index
    %25 = vector.load %arg7[%c0_21, %c0_22, %c0_23] : memref<1x18x128xf32, #tpu.memory_space<vmem>>, vector<1x1x128xf32>
    tpu.vector_store %arg7[%c0_21, %c0_22, %c0_23], %24 {strides = array<i32>} : memref<1x18x128xf32, #tpu.memory_space<vmem>>, vector<1x1x128xf32>,
    %c0_24 = arith.constant 0 : index
    %c17 = arith.constant 17 : index
    %c0_25 = arith.constant 0 : index
    %26 = vector.load %arg7[%c0_24, %c17, %c0_25] : memref<1x18x128xf32, #tpu.memory_space<vmem>>, vector<1x1x128xf32>
    tpu.vector_store %arg7[%c0_24, %c17, %c0_25], %24 {strides = array<i32>} : memref<1x18x128xf32, #tpu.memory_space<vmem>>, vector<1x1x128xf32>,
    %27 = vector.shape_cast %22 : vector<16x128xf32> to vector<1x16x128xf32>
    %c0_26 = arith.constant 0 : index
    %c1_27 = arith.constant 1 : index
    %c0_28 = arith.constant 0 : index
    %28 = vector.load %arg7[%c0_26, %c1_27, %c0_28] : memref<1x18x128xf32, #tpu.memory_space<vmem>>, vector<1x16x128xf32>
    tpu.vector_store %arg7[%c0_26, %c1_27, %c0_28], %27 {strides = array<i32>} : memref<1x18x128xf32, #tpu.memory_space<vmem>>, vector<1x16x128xf32>,
    %c0_29 = arith.constant 0 : index
    %c0_30 = arith.constant 0 : index
    %c0_31 = arith.constant 0 : index
    %29 = vector.load %arg7[%c0_29, %c0_30, %c0_31] : memref<1x18x128xf32, #tpu.memory_space<vmem>>, vector<1x16x128xf32>
    %30 = vector.shape_cast %29 : vector<1x16x128xf32> to vector<16x128xf32>
    %c0_32 = arith.constant 0 : index
    %c0_33 = arith.constant 0 : index
    %c0_34 = arith.constant 0 : index
    %31 = vector.load %arg4[%c0_32, %c0_33, %c0_34] : memref<3x128x64xf32, #tpu.memory_space<vmem>>, vector<1x128x64xf32>
    %32 = vector.shape_cast %31 : vector<1x128x64xf32> to vector<128x64xf32>
    %cst_35 = arith.constant dense<0.000000e+00> : vector<16x64xf32>
    %33 = tpu.matmul %30, %32, %cst_35 {dimension_numbers = #tpu.dot_dimension_numbers<[1], [0], [0], [1], [0, 0, 1, 1], [], []>} : vector<16x128xf32>, vector<128x64xf32>, vector<16x64xf32> -> vector<16x64xf32>
    %c0_36 = arith.constant 0 : index
    %c1_37 = arith.constant 1 : index
    %c0_38 = arith.constant 0 : index
    %34 = vector.load %arg7[%c0_36, %c1_37, %c0_38] : memref<1x18x128xf32, #tpu.memory_space<vmem>>, vector<1x16x128xf32>
    %35 = vector.shape_cast %34 : vector<1x16x128xf32> to vector<16x128xf32>
    %c1_39 = arith.constant 1 : index
    %c0_40 = arith.constant 0 : index
    %c0_41 = arith.constant 0 : index
    %36 = vector.load %arg4[%c1_39, %c0_40, %c0_41] : memref<3x128x64xf32, #tpu.memory_space<vmem>>, vector<1x128x64xf32>
    %37 = vector.shape_cast %36 : vector<1x128x64xf32> to vector<128x64xf32>
    %cst_42 = arith.constant dense<0.000000e+00> : vector<16x64xf32>
    %38 = tpu.matmul %35, %37, %cst_42 {dimension_numbers = #tpu.dot_dimension_numbers<[1], [0], [0], [1], [0, 0, 1, 1], [], []>} : vector<16x128xf32>, vector<128x64xf32>, vector<16x64xf32> -> vector<16x64xf32>
    %39 = arith.addf %33, %38 : vector<16x64xf32>
    %c0_43 = arith.constant 0 : index
    %c2_44 = arith.constant 2 : index
    %c0_45 = arith.constant 0 : index
    %40 = vector.load %arg7[%c0_43, %c2_44, %c0_45] : memref<1x18x128xf32, #tpu.memory_space<vmem>>, vector<1x16x128xf32>
    %41 = vector.shape_cast %40 : vector<1x16x128xf32> to vector<16x128xf32>
    %c2_46 = arith.constant 2 : index
    %c0_47 = arith.constant 0 : index
    %c0_48 = arith.constant 0 : index
    %42 = vector.load %arg4[%c2_46, %c0_47, %c0_48] : memref<3x128x64xf32, #tpu.memory_space<vmem>>, vector<1x128x64xf32>
    %43 = vector.shape_cast %42 : vector<1x128x64xf32> to vector<128x64xf32>
    %cst_49 = arith.constant dense<0.000000e+00> : vector<16x64xf32>
    %44 = tpu.matmul %41, %43, %cst_49 {dimension_numbers = #tpu.dot_dimension_numbers<[1], [0], [0], [1], [0, 0, 1, 1], [], []>} : vector<16x128xf32>, vector<128x64xf32>, vector<16x64xf32> -> vector<16x64xf32>
    %45 = arith.addf %39, %44 : vector<16x64xf32>
    %c0_50 = arith.constant 0 : index
    %c0_51 = arith.constant 0 : index
    %46 = vector.load %arg5[%c0_50, %c0_51] : memref<1x64xf32, #tpu.memory_space<vmem>>, vector<1x64xf32>
    %47 = vector.broadcast %46 : vector<1x64xf32> to vector<16x64xf32>
    %48 = arith.addf %45, %47 : vector<16x64xf32>
    %49 = arith.addf %48, %23 : vector<16x64xf32>
    %50 = vector.shape_cast %49 : vector<16x64xf32> to vector<1x16x64xf32>
    %c0_52 = arith.constant 0 : index
    %c0_53 = arith.constant 0 : index
    %c0_54 = arith.constant 0 : index
    %51 = vector.load %arg6[%c0_52, %c0_53, %c0_54] : memref<1x16x64xf32, #tpu.memory_space<vmem>>, vector<1x16x64xf32>
    tpu.vector_store %arg6[%c0_52, %c0_53, %c0_54], %50 {strides = array<i32>} : memref<1x16x64xf32, #tpu.memory_space<vmem>>, vector<1x16x64xf32>,
    return
  }
  func.func @transform_0(%arg0: i32) -> (i32, i32, i32) {
    %c0_i32 = arith.constant 0 : i32
    %c0_i32_0 = arith.constant 0 : i32
    %c0_i32_1 = arith.constant 0 : i32
    return %arg0, %c0_i32, %c0_i32_0 : i32, i32, i32
  }
  func.func @transform_1(%arg0: i32) -> (i32, i32, i32) {
    %c0_i32 = arith.constant 0 : i32
    %c0_i32_0 = arith.constant 0 : i32
    %c0_i32_1 = arith.constant 0 : i32
    %c0_i32_2 = arith.constant 0 : i32
    return %c0_i32, %c0_i32_0, %c0_i32_1 : i32, i32, i32
  }
  func.func @transform_2(%arg0: i32) -> (i32, i32) {
    %c0_i32 = arith.constant 0 : i32
    %c0_i32_0 = arith.constant 0 : i32
    %c0_i32_1 = arith.constant 0 : i32
    return %c0_i32, %c0_i32_0 : i32, i32
  }
  func.func @transform_3(%arg0: i32) -> (i32, i32, i32) {
    %c0_i32 = arith.constant 0 : i32
    %c0_i32_0 = arith.constant 0 : i32
    %c0_i32_1 = arith.constant 0 : i32
    %c0_i32_2 = arith.constant 0 : i32
    return %c0_i32, %c0_i32_0, %c0_i32_1 : i32, i32, i32
  }
  func.func @transform_4(%arg0: i32) -> (i32, i32) {
    %c0_i32 = arith.constant 0 : i32
    %c0_i32_0 = arith.constant 0 : i32
    %c0_i32_1 = arith.constant 0 : i32
    return %c0_i32, %c0_i32_0 : i32, i32
  }
  func.func @transform_5(%arg0: i32) -> (i32, i32, i32) {
    %c0_i32 = arith.constant 0 : i32
    %c0_i32_0 = arith.constant 0 : i32
    %c0_i32_1 = arith.constant 0 : i32
    return %arg0, %c0_i32, %c0_i32_0 : i32, i32, i32
  }
}

</mosaic_0001>

<llo_original>
// kernel: tpu_custom_call.1
$region0: #{tpu_custom_call.1}
  #allocation0 [shape = 'u32[]', space=smem, size = 0x4, offset = 0x4, fixed_abs, tag = 'smem constant byte address 0x4 - core index']
  #allocation1 [shape = 'u32[144,128]{1,0:T(1,128)}', space=vmem, size = 0x12000, scoped, tag = 'internal scratch']
  #allocation2 [shape = 'f32[1,18,128]{2,1,0:T(8,128)}', space=vmem, size = 0x3000, scoped, tag = 'scratch operand']
  %s0 = inlined_call_operand.vmem [shape: f32[2,18,72], index: 0, kind: input, shape index: {}]
  %s1 = inlined_call_operand.vmem [shape: f32[3,72,192], index: 1, kind: input, shape index: {}]
  %s2 = inlined_call_operand.vmem [shape: f32[1,192], index: 2, kind: input, shape index: {}]
  %s3 = inlined_call_operand.vmem [shape: f32[3,128,64], index: 3, kind: input, shape index: {}]
  %s4 = inlined_call_operand.vmem [shape: f32[1,64], index: 4, kind: input, shape index: {}]
  %s5 = inlined_call_operand.hbm [shape: f32[2,16,64], index: 5, kind: output, shape index: {}]
  %s6 = sld [smem:[#allocation0]]
  $region53: #{tpu_custom_call.1} parent=0
    _
  %s8 = ssub.s32 1, %s6
  %s9 = scalar_select 0, %s8, %s6
  $region1: #{tpu_custom_call.1} parent=0
    #allocation3 [shape = 'u8[16384]{0}', space=vmem, size = 0x4000, scoped, tag = 'output window, operand 0']
    #allocation4 [shape = 's32[2]{0}', space=sflag, size = 0x8, scoped, tag = 'scoped memory for tpu_custom_call.1']
    %10 = vsyncpa [#allocation4], 0
    %s11 = scalar_lea.sflag [#allocation4], 1
    %12 = vsyncpa %s11, 0
    loop: start=0, step=1, limit=4
    $region2: #{tpu_custom_call.1} parent=1 // loop_pre_header
      _
    $region3: #{tpu_custom_call.1} parent=1 // loop_header
      %s14 = sphi 0, %s18
      %p15 = scmp.ge.s32.totalorder %s14, 4
      %s24 = sphi 0, %s26
      %s27 = sphi 0, %s24
      %s28 = sphi 0, %s27
      %s44 = sphi 0, %s28
      %s48 = sphi 0, %s48
      %s50 = sphi 0, %s48
      %s51 = sphi 0, %s50
      %s65 = sphi 0, %s51
      %s69 = sphi 0, %s69
      %s71 = sphi 0, %s69
      %s72 = sphi 0, %s71
      %s86 = sphi 0, %s72
      %s90 = sphi 0, %s90
      %s92 = sphi 0, %s90
      %s93 = sphi 0, %s92
      %s107 = sphi 0, %s93
      %s111 = sphi 0, %s111
      %s113 = sphi 0, %s111
      %s114 = sphi 0, %s113
      %s128 = sphi 0, %s114
      %s134 = sphi 0, %s136
      %s137 = sphi 0, %s134
      %s138 = sphi 0, %s137
      %s154 = sphi 0, %s138
    $region4: #{tpu_custom_call.1} parent=1 // loop_header_branch
      %17 = sbr.rel (%p15) target = $region8
    $region5: #{tpu_custom_call.1} parent=1 // loop_body
      %s19 = ssub.s32 %s14, 1
      %s20 = ssub.s32 %s14, 2
      %s21 = sadd.s32 %s14, 1
      %s22 = ssub.s32 %s14, %s21
      %p23 = scmp.eq.s32.totalorder %s22, 0
      %s25 = sadd.s32 %s24, 1
      %s26 = scalar_select %p23, %s24, %s25
      %p29 = pneg %p23
      %p30 = scmp.eq.s32.totalorder %s14, 1
      %p31 = por %p29, %p30
      %p32 = scmp.ne.s32.totalorder %s24, %s27
      %p33 = scmp.eq.s32.totalorder %s14, 0
      %p34 = por %p32, %p33
      %p35 = scmp.ne.s32.totalorder %s24, %s27
      %p36 = scmp.eq.s32.totalorder %s19, 1
      %p37 = por %p35, %p36
      %p38 = scmp.ne.s32.totalorder %s27, %s28
      %p39 = scmp.eq.s32.totalorder %s19, 0
      %p40 = por %p38, %p39
      %p41 = scmp.ne.s32.totalorder %s27, %s28
      %p42 = scmp.eq.s32.totalorder %s20, 1
      %p43 = por %p41, %p42
      %p45 = scmp.ne.s32.totalorder %s28, %s44
      %p46 = scmp.eq.s32.totalorder %s20, 0
      %p47 = por %p45, %p46
      %s49 = sadd.s32 %s48, 1
      %p52 = scmp.eq.s32.totalorder %s14, 1
      %p53 = scmp.ne.s32.totalorder %s48, %s50
      %p54 = scmp.eq.s32.totalorder %s14, 0
      %p55 = por %p53, %p54
      %p56 = scmp.ne.s32.totalorder %s48, %s50
      %p57 = scmp.eq.s32.totalorder %s19, 1
      %p58 = por %p56, %p57
      %p59 = scmp.ne.s32.totalorder %s50, %s51
      %p60 = scmp.eq.s32.totalorder %s19, 0
      %p61 = por %p59, %p60
      %p62 = scmp.ne.s32.totalorder %s50, %s51
      %p63 = scmp.eq.s32.totalorder %s20, 1
      %p64 = por %p62, %p63
      %p66 = scmp.ne.s32.totalorder %s51, %s65
      %p67 = scmp.eq.s32.totalorder %s20, 0
      %p68 = por %p66, %p67
      %s70 = sadd.s32 %s69, 1
      %p73 = scmp.eq.s32.totalorder %s14, 1
      %p74 = scmp.ne.s32.totalorder %s69, %s71
      %p75 = scmp.eq.s32.totalorder %s14, 0
      %p76 = por %p74, %p75
      %p77 = scmp.ne.s32.totalorder %s69, %s71
      %p78 = scmp.eq.s32.totalorder %s19, 1
      %p79 = por %p77, %p78
      %p80 = scmp.ne.s32.totalorder %s71, %s72
      %p81 = scmp.eq.s32.totalorder %s19, 0
      %p82 = por %p80, %p81
      %p83 = scmp.ne.s32.totalorder %s71, %s72
      %p84 = scmp.eq.s32.totalorder %s20, 1
      %p85 = por %p83, %p84
      %p87 = scmp.ne.s32.totalorder %s72, %s86
      %p88 = scmp.eq.s32.totalorder %s20, 0
      %p89 = por %p87, %p88
      %s91 = sadd.s32 %s90, 1
      %p94 = scmp.eq.s32.totalorder %s14, 1
      %p95 = scmp.ne.s32.totalorder %s90, %s92
      %p96 = scmp.eq.s32.totalorder %s14, 0
      %p97 = por %p95, %p96
      %p98 = scmp.ne.s32.totalorder %s90, %s92
      %p99 = scmp.eq.s32.totalorder %s19, 1
      %p100 = por %p98, %p99
      %p101 = scmp.ne.s32.totalorder %s92, %s93
      %p102 = scmp.eq.s32.totalorder %s19, 0
      %p103 = por %p101, %p102
      %p104 = scmp.ne.s32.totalorder %s92, %s93
      %p105 = scmp.eq.s32.totalorder %s20, 1
      %p106 = por %p104, %p105
      %p108 = scmp.ne.s32.totalorder %s93, %s107
      %p109 = scmp.eq.s32.totalorder %s20, 0
      %p110 = por %p108, %p109
      %s112 = sadd.s32 %s111, 1
      %p115 = scmp.eq.s32.totalorder %s14, 1
      %p116 = scmp.ne.s32.totalorder %s111, %s113
      %p117 = scmp.eq.s32.totalorder %s14, 0
      %p118 = por %p116, %p117
      %p119 = scmp.ne.s32.totalorder %s111, %s113
      %p120 = scmp.eq.s32.totalorder %s19, 1
      %p121 = por %p119, %p120
      %p122 = scmp.ne.s32.totalorder %s113, %s114
      %p123 = scmp.eq.s32.totalorder %s19, 0
      %p124 = por %p122, %p123
      %p125 = scmp.ne.s32.totalorder %s113, %s114
      %p126 = scmp.eq.s32.totalorder %s20, 1
      %p127 = por %p125, %p126
      %p129 = scmp.ne.s32.totalorder %s114, %s128
      %p130 = scmp.eq.s32.totalorder %s20, 0
      %p131 = por %p129, %p130
      %s132 = ssub.s32 %s14, %s21
      %p133 = scmp.eq.s32.totalorder %s132, 0
      %s135 = sadd.s32 %s134, 1
      %s136 = scalar_select %p133, %s134, %s135
      %p139 = pneg %p133
      %p140 = scmp.eq.s32.totalorder %s14, 1
      %p141 = por %p139, %p140
      %p142 = scmp.ne.s32.totalorder %s134, %s137
      %p143 = scmp.eq.s32.totalorder %s14, 0
      %p144 = por %p142, %p143
      %p145 = scmp.ne.s32.totalorder %s134, %s137
      %p146 = scmp.eq.s32.totalorder %s19, 1
      %p147 = por %p145, %p146
      %p148 = scmp.ne.s32.totalorder %s137, %s138
      %p149 = scmp.eq.s32.totalorder %s19, 0
      %p150 = por %p148, %p149
      %p151 = scmp.ne.s32.totalorder %s137, %s138
      %p152 = scmp.eq.s32.totalorder %s20, 1
      %p153 = por %p151, %p152
      %p155 = scmp.ne.s32.totalorder %s138, %s154
      %p156 = scmp.eq.s32.totalorder %s20, 0
      %p157 = por %p155, %p156
      %p158 = scmp.le.s32.totalorder 1, %s14
      %p159 = scmp.lt.s32.totalorder %s14, 3
      %p160 = pnand %p158, %p159
      %p161 = pneg %p160
      // Predicated region
      $region9: #{tpu_custom_call.1} parent=5 // pred_check
        _
      $region10: #{tpu_custom_call.1} parent=5 // pred_check_branch
        %163 = sbr.rel (%p160) target = $region12
      $region11: #{tpu_custom_call.1} parent=5 // pred_region
        %s164 = ssub.s32 %s14, 1
        // Predicated region
        $region13: #{tpu_custom_call.1} parent=11 // pred_check
          %p165 = pneg %p61
        $region14: #{tpu_custom_call.1} parent=11 // pred_check_branch
          %167 = sbr.rel (%p165) target = $region16
        $region15: #{tpu_custom_call.1} parent=11 // pred_region
          _
        $region16: #{tpu_custom_call.1} parent=11 // pred_fallthru
          _
        // Predicated region
        $region17: #{tpu_custom_call.1} parent=11 // pred_check
          %p168 = pneg %p82
        $region18: #{tpu_custom_call.1} parent=11 // pred_check_branch
          %170 = sbr.rel (%p168) target = $region20
        $region19: #{tpu_custom_call.1} parent=11 // pred_region
          _
        $region20: #{tpu_custom_call.1} parent=11 // pred_fallthru
          _
        // Predicated region
        $region21: #{tpu_custom_call.1} parent=11 // pred_check
          %p171 = pneg %p103
        $region22: #{tpu_custom_call.1} parent=11 // pred_check_branch
          %173 = sbr.rel (%p171) target = $region24
        $region23: #{tpu_custom_call.1} parent=11 // pred_region
          _
        $region24: #{tpu_custom_call.1} parent=11 // pred_fallthru
          _
        // Predicated region
        $region25: #{tpu_custom_call.1} parent=11 // pred_check
          %p174 = pneg %p124
        $region26: #{tpu_custom_call.1} parent=11 // pred_check_branch
          %176 = sbr.rel (%p174) target = $region28
        $region27: #{tpu_custom_call.1} parent=11 // pred_region
          _
        $region28: #{tpu_custom_call.1} parent=11 // pred_fallthru
          _
      $region12: #{tpu_custom_call.1} parent=5 // pred_fallthru
        _
      %p177 = scmp.lt.s32.totalorder %s14, 2
      // Predicated region
      $region29: #{tpu_custom_call.1} parent=5 // pred_check
        %p178 = pneg %p177
      $region30: #{tpu_custom_call.1} parent=5 // pred_check_branch
        %180 = sbr.rel (%p178) target = $region32
      $region31: #{tpu_custom_call.1} parent=5 // pred_region
        // Predicated region
        $region33: #{tpu_custom_call.1} parent=31 // pred_check
          %p181 = pneg %p34
        $region34: #{tpu_custom_call.1} parent=31 // pred_check_branch
          %183 = sbr.rel (%p181) target = $region36
        $region35: #{tpu_custom_call.1} parent=31 // pred_region
          %p184 = scmp.lt.s32.totalorder %s14, 1
          %s185 = scalar_select %p184, %s14, 1
          %s186 = smul.addr %s185, 3
          %s187 = smul.addr %s186, 8
          %s188 = scalar_lea.vmem %s0, %s187
        $region36: #{tpu_custom_call.1} parent=31 // pred_fallthru
          _
      $region32: #{tpu_custom_call.1} parent=5 // pred_fallthru
        _
      %p189 = scmp.le.s32.totalorder 1, %s14
      %p190 = scmp.lt.s32.totalorder %s14, 3
      %p191 = pnand %p189, %p190
      %p192 = pneg %p191
      // Predicated region
      $region37: #{tpu_custom_call.1} parent=5 // pred_check
        _
      $region38: #{tpu_custom_call.1} parent=5 // pred_check_branch
        %194 = sbr.rel (%p191) target = $region40
      $region39: #{tpu_custom_call.1} parent=5 // pred_region
        %s195 = ssub.s32 %s14, 1
        %p196 = scmp.lt.s32.totalorder %s19, 1
        %s197 = scalar_select %p196, %s19, 1
        %s198 = smul.addr %s197, 3
        %s199 = smul.addr %s198, 8
        %s200 = scalar_lea.vmem %s0, %s199
        %p201 = pneg %p40
        %p202 = pneg %p37
        %p203 = pneg %p61
        %p204 = pneg %p58
        %p205 = pneg %p82
        %p206 = pneg %p79
        %p207 = pneg %p103
        %p208 = pneg %p100
        %p209 = pneg %p124
        %p210 = pneg %p121
        %p211 = pneg %p150
        %p212 = pneg %p147
        %s213 = sand.u32 %s137, 1
        %s214 = scalar_lea.sflag [#allocation4], %s213
        %s215 = sand.u32 %s137, 1
        %s216 = smul.addr %s215, 16
        %s217 = scalar_lea.vmem [#allocation3], %s216
        %p218 = scmp.lt.s32.totalorder %s19, 1
        %s219 = scalar_select %p218, %s19, 1
        %s220 = smul.addr %s219, 3
        %s221 = smul.addr %s220, 8
        %s222 = scalar_lea.vmem %s0, %s221
        %v223 = vld [vmem:[%s222] sm:$0xff]
        %v224 = vld [vmem:[%s222 + $0x8] sm:$0xff]
        %v225 = vld [vmem:[%s1] sm:$0xff]
        %v226 = vld [vmem:[%s1 + $0x8] sm:$0xff]
        %v227 = vld [vmem:[%s1 + $0x10] sm:$0xff]
        %v228 = vld [vmem:[%s1 + $0x18] sm:$0xff]
        %v229 = vld [vmem:[%s1 + $0x20] sm:$0xff]
        %v230 = vld [vmem:[%s1 + $0x28] sm:$0xff]
        %v231 = vld [vmem:[%s1 + $0x30] sm:$0xff]
        %v232 = vld [vmem:[%s1 + $0x38] sm:$0xff]
        %v233 = vld [vmem:[%s1 + $0x40] sm:$0xff]
        %v234 = vld [vmem:[%s1 + $0x48] sm:$0xff]
        %v235 = vld [vmem:[%s1 + $0x50] sm:$0xff]
        %v236 = vld [vmem:[%s1 + $0x58] sm:$0xff]
        %v237 = vld [vmem:[%s1 + $0x60] sm:$0xff]
        %v238 = vld [vmem:[%s1 + $0x68] sm:$0xff]
        %v239 = vld [vmem:[%s1 + $0x70] sm:$0xff]
        %v240 = vld [vmem:[%s1 + $0x78] sm:$0xff]
        %v241 = vld [vmem:[%s1 + $0x80] sm:$0xff]
        %v242 = vld [vmem:[%s1 + $0x88] sm:$0xff]
        %v243 = vld [vmem:[%s222 + $0x1] sm:$0xff]
        %v244 = vld [vmem:[%s222 + $0x9] sm:$0xff]
        %s245 = scalar_lea.vmem %s1, 144
        %v246 = vld [vmem:[%s245] sm:$0xff]
        %v247 = vld [vmem:[%s245 + $0x8] sm:$0xff]
        %v248 = vld [vmem:[%s245 + $0x10] sm:$0xff]
        %v249 = vld [vmem:[%s245 + $0x18] sm:$0xff]
        %v250 = vld [vmem:[%s245 + $0x20] sm:$0xff]
        %v251 = vld [vmem:[%s245 + $0x28] sm:$0xff]
        %v252 = vld [vmem:[%s245 + $0x30] sm:$0xff]
        %v253 = vld [vmem:[%s245 + $0x38] sm:$0xff]
        %v254 = vld [vmem:[%s245 + $0x40] sm:$0xff]
        %v255 = vld [vmem:[%s245 + $0x48] sm:$0xff]
        %v256 = vld [vmem:[%s245 + $0x50] sm:$0xff]
        %v257 = vld [vmem:[%s245 + $0x58] sm:$0xff]
        %v258 = vld [vmem:[%s245 + $0x60] sm:$0xff]
        %v259 = vld [vmem:[%s245 + $0x68] sm:$0xff]
        %v260 = vld [vmem:[%s245 + $0x70] sm:$0xff]
        %v261 = vld [vmem:[%s245 + $0x78] sm:$0xff]
        %v262 = vld [vmem:[%s245 + $0x80] sm:$0xff]
        %v263 = vld [vmem:[%s245 + $0x88] sm:$0xff]
        %vm264 = vcmask 588800
        %v266 = vsel %vm264, %v243, 0
        %v269 = vsel %vm264, %v244, 0
        %271 = vmatprep.subr.mxu0 %v247
        %272 = vmatpush1.msra.mxu0 %v246
        %273 = vmatprep.subr.mxu0 %v249
        %274 = vmatpush1.msra.mxu0 %v248
        %275 = vmatprep.subr.mxu0 %v251
        %276 = vmatpush1.msra.mxu0 %v250
        %277 = vmatprep.subr.mxu0 %v253
        %278 = vmatpush1.msra.mxu0 %v252
        %279 = vmatprep.subr.mxu0 %v255
        %280 = vmatpush1.msra.mxu0 %v254
        %281 = vmatprep.subr.mxu0 %v257
        %282 = vmatpush1.msra.mxu0 %v256
        %283 = vmatprep.subr.mxu0 %v259
        %284 = vmatpush1.msra.mxu0 %v258
        %285 = vmatprep.subr.mxu0 %v261
        %286 = vmatpush1.msra.mxu0 %v260
        %287 = vmatprep.subr.mxu0 %v263
        %288 = vmatpush1.msra.mxu0 %v262
        %289 = vmatprep.subr.mxu0 0.0
        %290 = vmatpush1.msra.mxu0 0.0
        %291 = vmatprep.subr.mxu0 0.0
        %292 = vmatpush1.msra.mxu0 0.0
        %293 = vmatprep.subr.mxu0 0.0
        %294 = vmatpush1.msra.mxu0 0.0
        %295 = vmatprep.subr.mxu0 0.0
        %296 = vmatpush1.msra.mxu0 0.0
        %297 = vmatprep.subr.mxu0 0.0
        %298 = vmatpush1.msra.mxu0 0.0
        %299 = vmatprep.subr.mxu0 0.0
        %300 = vmatpush1.msra.mxu0 0.0
        %301 = vmatprep.subr.mxu0 0.0
        %302 = vmatpush1.msra.mxu0 0.0
        %303 = vmatprep.subr.mxu0 0.0
        %304 = vmatpush1.msra.mxu0 0.0
        %305 = vmatprep.subr.mxu0 0.0
        %306 = vmatpush1.msra.mxu0 0.0
        %307 = vmatprep.subr.mxu0 0.0
        %308 = vmatpush1.msra.mxu0 0.0
        %309 = vmatprep.subr.mxu0 0.0
        %310 = vmatpush1.msra.mxu0 0.0
        %311 = vmatprep.subr.mxu0 0.0
        %312 = vmatpush1.msra.mxu0 0.0
        %313 = vmatprep.subr.mxu0 0.0
        %314 = vmatpush1.msra.mxu0 0.0
        %315 = vmatprep.subr.mxu0 0.0
        %316 = vmatpush1.msra.mxu0 0.0
        %317 = vmatprep.subr.mxu0 0.0
        %318 = vmatpush1.msra.mxu0 0.0
        %319 = vmatprep.subr.mxu0 0.0
        %320 = vmatpush1.msra.mxu0 0.0
        %321 = vmatprep.subr.mxu0 0.0
        %322 = vmatpush1.msra.mxu0 0.0
        %323 = vmatprep.subr.mxu0 0.0
        %324 = vmatpush1.msra.mxu0 0.0
        %325 = vmatprep.subr.mxu0 0.0
        %326 = vmatpush1.msra.mxu0 0.0
        %327 = vmatprep.subr.mxu0 0.0
        %328 = vmatpush1.msra.mxu0 0.0
        %329 = vmatprep.subr.mxu0 0.0
        %330 = vmatpush1.msra.mxu0 0.0
        %331 = vmatprep.subr.mxu0 0.0
        %332 = vmatpush1.msra.mxu0 0.0
        %333 = vmatprep.subr.mxu0 0.0
        %334 = vmatpush1.msra.mxu0 0.0
        %335 = vmatprep.mubr.f32.mxu0 0.0
        %336 = vmatmul.mubr.f32.gmra.mrb[0].mxu0 %v266
        %v337 = vpop.f32.mrb[0].mxu0
        %v338 = vadd.f32 0.0, %v337
        %v339 = vpop.f32.mrb[0].mxu0
        %v340 = vadd.f32 0.0, %v339
        %341 = vmatprep.mubr.f32.mxu0 0.0
        %342 = vmatmul.mubr.f32.gmra.mrb[0].mxu0 %v269
        %v343 = vpop.f32.mrb[0].mxu0
        %v344 = vadd.f32 0.0, %v343
        %v345 = vpop.f32.mrb[0].mxu0
        %v346 = vadd.f32 0.0, %v345
        %347 = vdwg.mxu0
        %v349 = vsel %vm264, %v223, 0
        %v352 = vsel %vm264, %v224, 0
        %354 = vmatprep.subr.mxu0 %v226
        %355 = vmatpush1.msra.mxu0 %v225
        %356 = vmatprep.subr.mxu0 %v228
        %357 = vmatpush1.msra.mxu0 %v227
        %358 = vmatprep.subr.mxu0 %v230
        %359 = vmatpush1.msra.mxu0 %v229
        %360 = vmatprep.subr.mxu0 %v232
        %361 = vmatpush1.msra.mxu0 %v231
        %362 = vmatprep.subr.mxu0 %v234
        %363 = vmatpush1.msra.mxu0 %v233
        %364 = vmatprep.subr.mxu0 %v236
        %365 = vmatpush1.msra.mxu0 %v235
        %366 = vmatprep.subr.mxu0 %v238
        %367 = vmatpush1.msra.mxu0 %v237
        %368 = vmatprep.subr.mxu0 %v240
        %369 = vmatpush1.msra.mxu0 %v239
        %370 = vmatprep.subr.mxu0 %v242
        %371 = vmatpush1.msra.mxu0 %v241
        %372 = vmatprep.subr.mxu0 0.0
        %373 = vmatpush1.msra.mxu0 0.0
        %374 = vmatprep.subr.mxu0 0.0
        %375 = vmatpush1.msra.mxu0 0.0
        %376 = vmatprep.subr.mxu0 0.0
        %377 = vmatpush1.msra.mxu0 0.0
        %378 = vmatprep.subr.mxu0 0.0
        %379 = vmatpush1.msra.mxu0 0.0
        %380 = vmatprep.subr.mxu0 0.0
        %381 = vmatpush1.msra.mxu0 0.0
        %382 = vmatprep.subr.mxu0 0.0
        %383 = vmatpush1.msra.mxu0 0.0
        %384 = vmatprep.subr.mxu0 0.0
        %385 = vmatpush1.msra.mxu0 0.0
        %386 = vmatprep.subr.mxu0 0.0
        %387 = vmatpush1.msra.mxu0 0.0
        %388 = vmatprep.subr.mxu0 0.0
        %389 = vmatpush1.msra.mxu0 0.0
        %390 = vmatprep.subr.mxu0 0.0
        %391 = vmatpush1.msra.mxu0 0.0
        %392 = vmatprep.subr.mxu0 0.0
        %393 = vmatpush1.msra.mxu0 0.0
        %394 = vmatprep.subr.mxu0 0.0
        %395 = vmatpush1.msra.mxu0 0.0
        %396 = vmatprep.subr.mxu0 0.0
        %397 = vmatpush1.msra.mxu0 0.0
        %398 = vmatprep.subr.mxu0 0.0
        %399 = vmatpush1.msra.mxu0 0.0
        %400 = vmatprep.subr.mxu0 0.0
        %401 = vmatpush1.msra.mxu0 0.0
        %402 = vmatprep.subr.mxu0 0.0
        %403 = vmatpush1.msra.mxu0 0.0
        %404 = vmatprep.subr.mxu0 0.0
        %405 = vmatpush1.msra.mxu0 0.0
        %406 = vmatprep.subr.mxu0 0.0
        %407 = vmatpush1.msra.mxu0 0.0
        %408 = vmatprep.subr.mxu0 0.0
        %409 = vmatpush1.msra.mxu0 0.0
        %410 = vmatprep.subr.mxu0 0.0
        %411 = vmatpush1.msra.mxu0 0.0
        %412 = vmatprep.subr.mxu0 0.0
        %413 = vmatpush1.msra.mxu0 0.0
        %414 = vmatprep.subr.mxu0 0.0
        %415 = vmatpush1.msra.mxu0 0.0
        %416 = vmatprep.subr.mxu0 0.0
        %417 = vmatpush1.msra.mxu0 0.0
        %418 = vmatprep.mubr.f32.mxu0 0.0
        %419 = vmatmul.mubr.f32.gmra.mrb[0].mxu0 %v349
        %v420 = vpop.f32.mrb[0].mxu0
        %v421 = vadd.f32 %v338, %v420
        %v422 = vpop.f32.mrb[0].mxu0
        %v423 = vadd.f32 %v340, %v422
        %424 = vmatprep.mubr.f32.mxu0 0.0
        %425 = vmatmul.mubr.f32.gmra.mrb[0].mxu0 %v352
        %v426 = vpop.f32.mrb[0].mxu0
        %v427 = vadd.f32 %v344, %v426
        %v428 = vpop.f32.mrb[0].mxu0
        %v429 = vadd.f32 %v346, %v428
        %430 = vdwg.mxu0
        %v431 = vld [vmem:[%s222 + $0x2] sm:$0xff]
        %v432 = vld [vmem:[%s222 + $0xa] sm:$0xff]
        %s433 = scalar_lea.vmem %s1, 288
        %v434 = vld [vmem:[%s433] sm:$0xff]
        %v435 = vld [vmem:[%s433 + $0x8] sm:$0xff]
        %v436 = vld [vmem:[%s433 + $0x10] sm:$0xff]
        %v437 = vld [vmem:[%s433 + $0x18] sm:$0xff]
        %v438 = vld [vmem:[%s433 + $0x20] sm:$0xff]
        %v439 = vld [vmem:[%s433 + $0x28] sm:$0xff]
        %v440 = vld [vmem:[%s433 + $0x30] sm:$0xff]
        %v441 = vld [vmem:[%s433 + $0x38] sm:$0xff]
        %v442 = vld [vmem:[%s433 + $0x40] sm:$0xff]
        %v443 = vld [vmem:[%s433 + $0x48] sm:$0xff]
        %v444 = vld [vmem:[%s433 + $0x50] sm:$0xff]
        %v445 = vld [vmem:[%s433 + $0x58] sm:$0xff]
        %v446 = vld [vmem:[%s433 + $0x60] sm:$0xff]
        %v447 = vld [vmem:[%s433 + $0x68] sm:$0xff]
        %v448 = vld [vmem:[%s433 + $0x70] sm:$0xff]
        %v449 = vld [vmem:[%s433 + $0x78] sm:$0xff]
        %v450 = vld [vmem:[%s433 + $0x80] sm:$0xff]
        %v451 = vld [vmem:[%s433 + $0x88] sm:$0xff]
        %v453 = vsel %vm264, %v431, 0
        %v456 = vsel %vm264, %v432, 0
        %458 = vmatprep.subr.mxu0 %v435
        %459 = vmatpush1.msra.mxu0 %v434
        %460 = vmatprep.subr.mxu0 %v437
        %461 = vmatpush1.msra.mxu0 %v436
        %462 = vmatprep.subr.mxu0 %v439
        %463 = vmatpush1.msra.mxu0 %v438
        %464 = vmatprep.subr.mxu0 %v441
        %465 = vmatpush1.msra.mxu0 %v440
        %466 = vmatprep.subr.mxu0 %v443
        %467 = vmatpush1.msra.mxu0 %v442
        %468 = vmatprep.subr.mxu0 %v445
        %469 = vmatpush1.msra.mxu0 %v444
        %470 = vmatprep.subr.mxu0 %v447
        %471 = vmatpush1.msra.mxu0 %v446
        %472 = vmatprep.subr.mxu0 %v449
        %473 = vmatpush1.msra.mxu0 %v448
        %474 = vmatprep.subr.mxu0 %v451
        %475 = vmatpush1.msra.mxu0 %v450
        %476 = vmatprep.subr.mxu0 0.0
        %477 = vmatpush1.msra.mxu0 0.0
        %478 = vmatprep.subr.mxu0 0.0
        %479 = vmatpush1.msra.mxu0 0.0
        %480 = vmatprep.subr.mxu0 0.0
        %481 = vmatpush1.msra.mxu0 0.0
        %482 = vmatprep.subr.mxu0 0.0
        %483 = vmatpush1.msra.mxu0 0.0
        %484 = vmatprep.subr.mxu0 0.0
        %485 = vmatpush1.msra.mxu0 0.0
        %486 = vmatprep.subr.mxu0 0.0
        %487 = vmatpush1.msra.mxu0 0.0
        %488 = vmatprep.subr.mxu0 0.0
        %489 = vmatpush1.msra.mxu0 0.0
        %490 = vmatprep.subr.mxu0 0.0
        %491 = vmatpush1.msra.mxu0 0.0
        %492 = vmatprep.subr.mxu0 0.0
        %493 = vmatpush1.msra.mxu0 0.0
        %494 = vmatprep.subr.mxu0 0.0
        %495 = vmatpush1.msra.mxu0 0.0
        %496 = vmatprep.subr.mxu0 0.0
        %497 = vmatpush1.msra.mxu0 0.0
        %498 = vmatprep.subr.mxu0 0.0
        %499 = vmatpush1.msra.mxu0 0.0
        %500 = vmatprep.subr.mxu0 0.0
        %501 = vmatpush1.msra.mxu0 0.0
        %502 = vmatprep.subr.mxu0 0.0
        %503 = vmatpush1.msra.mxu0 0.0
        %504 = vmatprep.subr.mxu0 0.0
        %505 = vmatpush1.msra.mxu0 0.0
        %506 = vmatprep.subr.mxu0 0.0
        %507 = vmatpush1.msra.mxu0 0.0
        %508 = vmatprep.subr.mxu0 0.0
        %509 = vmatpush1.msra.mxu0 0.0
        %510 = vmatprep.subr.mxu0 0.0
        %511 = vmatpush1.msra.mxu0 0.0
        %512 = vmatprep.subr.mxu0 0.0
        %513 = vmatpush1.msra.mxu0 0.0
        %514 = vmatprep.subr.mxu0 0.0
        %515 = vmatpush1.msra.mxu0 0.0
        %516 = vmatprep.subr.mxu0 0.0
        %517 = vmatpush1.msra.mxu0 0.0
        %518 = vmatprep.subr.mxu0 0.0
        %519 = vmatpush1.msra.mxu0 0.0
        %520 = vmatprep.subr.mxu0 0.0
        %521 = vmatpush1.msra.mxu0 0.0
        %522 = vmatprep.mubr.f32.mxu0 0.0
        %523 = vmatmul.mubr.f32.gmra.mrb[0].mxu0 %v453
        %v524 = vpop.f32.mrb[0].mxu0
        %v525 = vadd.f32 0.0, %v524
        %v526 = vpop.f32.mrb[0].mxu0
        %v527 = vadd.f32 0.0, %v526
        %528 = vmatprep.mubr.f32.mxu0 0.0
        %529 = vmatmul.mubr.f32.gmra.mrb[0].mxu0 %v456
        %v530 = vpop.f32.mrb[0].mxu0
        %v531 = vadd.f32 0.0, %v530
        %v532 = vpop.f32.mrb[0].mxu0
        %v533 = vadd.f32 0.0, %v532
        %534 = vdwg.mxu0
        %v535 = vadd.f32 %v421, %v525
        %v536 = vadd.f32 %v423, %v527
        %v537 = vadd.f32 %v427, %v531
        %v538 = vadd.f32 %v429, %v533
        %v539 = vld [vmem:[%s2] sm:$0x3]
        %v541 = vlaneseq
        %v542 = vshrl.u32 %v541, 7
        %v543 = vsub.s32 0, %v542
        %v544 = vrot.slane %v539, %v543
        %v545 = vlaneseq
        %v546 = vshrl.u32 %v545, 7
        %v547 = vsub.s32 1, %v546
        %v548 = vrot.slane %v539, %v547
        %v551 = vadd.f32 %v535, %v544
        %v552 = vadd.f32 %v536, %v548
        %v553 = vadd.f32 %v537, %v544
        %v554 = vadd.f32 %v538, %v548
        %v555 = vmax.f32 %v551, 0.0
        %v556 = vmax.f32 %v553, 0.0
        %557 = vst [vmem:[#allocation2] sm:$0x1] 0.0
        %558 = vst [vmem:[#allocation2 + $0x11] sm:$0x1] 0.0
        %559 = vst [vmem:[#allocation2 + $0x1] sm:$0xff] %v555
        %560 = vst [vmem:[#allocation2 + $0x9] sm:$0xff] %v556
        %v561 = vld [vmem:[#allocation2] sm:$0xff]
        %v562 = vld [vmem:[#allocation2 + $0x8] sm:$0xff]
        %v563 = vld [vmem:[%s3] sm:$0xff]
        %v564 = vld [vmem:[%s3 + $0x8] sm:$0xff]
        %v565 = vld [vmem:[%s3 + $0x10] sm:$0xff]
        %v566 = vld [vmem:[%s3 + $0x18] sm:$0xff]
        %v567 = vld [vmem:[%s3 + $0x20] sm:$0xff]
        %v568 = vld [vmem:[%s3 + $0x28] sm:$0xff]
        %v569 = vld [vmem:[%s3 + $0x30] sm:$0xff]
        %v570 = vld [vmem:[%s3 + $0x38] sm:$0xff]
        %v571 = vld [vmem:[%s3 + $0x40] sm:$0xff]
        %v572 = vld [vmem:[%s3 + $0x48] sm:$0xff]
        %v573 = vld [vmem:[%s3 + $0x50] sm:$0xff]
        %v574 = vld [vmem:[%s3 + $0x58] sm:$0xff]
        %v575 = vld [vmem:[%s3 + $0x60] sm:$0xff]
        %v576 = vld [vmem:[%s3 + $0x68] sm:$0xff]
        %v577 = vld [vmem:[%s3 + $0x70] sm:$0xff]
        %v578 = vld [vmem:[%s3 + $0x78] sm:$0xff]
        %v579 = vld [vmem:[#allocation2 + $0x1] sm:$0xff]
        %v580 = vld [vmem:[#allocation2 + $0x9] sm:$0xff]
        %s581 = scalar_lea.vmem %s3, 128
        %v582 = vld [vmem:[%s581] sm:$0xff]
        %v583 = vld [vmem:[%s581 + $0x8] sm:$0xff]
        %v584 = vld [vmem:[%s581 + $0x10] sm:$0xff]
        %v585 = vld [vmem:[%s581 + $0x18] sm:$0xff]
        %v586 = vld [vmem:[%s581 + $0x20] sm:$0xff]
        %v587 = vld [vmem:[%s581 + $0x28] sm:$0xff]
        %v588 = vld [vmem:[%s581 + $0x30] sm:$0xff]
        %v589 = vld [vmem:[%s581 + $0x38] sm:$0xff]
        %v590 = vld [vmem:[%s581 + $0x40] sm:$0xff]
        %v591 = vld [vmem:[%s581 + $0x48] sm:$0xff]
        %v592 = vld [vmem:[%s581 + $0x50] sm:$0xff]
        %v593 = vld [vmem:[%s581 + $0x58] sm:$0xff]
        %v594 = vld [vmem:[%s581 + $0x60] sm:$0xff]
        %v595 = vld [vmem:[%s581 + $0x68] sm:$0xff]
        %v596 = vld [vmem:[%s581 + $0x70] sm:$0xff]
        %v597 = vld [vmem:[%s581 + $0x78] sm:$0xff]
        %598 = vmatprep.subr.mxu0 0.0
        %599 = vmatpush1.msra.mxu0 %v582
        %600 = vmatprep.subr.mxu0 0.0
        %601 = vmatpush1.msra.mxu0 %v583
        %602 = vmatprep.subr.mxu0 0.0
        %603 = vmatpush1.msra.mxu0 %v584
        %604 = vmatprep.subr.mxu0 0.0
        %605 = vmatpush1.msra.mxu0 %v585
        %606 = vmatprep.subr.mxu0 0.0
        %607 = vmatpush1.msra.mxu0 %v586
        %608 = vmatprep.subr.mxu0 0.0
        %609 = vmatpush1.msra.mxu0 %v587
        %610 = vmatprep.subr.mxu0 0.0
        %611 = vmatpush1.msra.mxu0 %v588
        %612 = vmatprep.subr.mxu0 0.0
        %613 = vmatpush1.msra.mxu0 %v589
        %614 = vmatprep.subr.mxu0 0.0
        %615 = vmatpush1.msra.mxu0 %v590
        %616 = vmatprep.subr.mxu0 0.0
        %617 = vmatpush1.msra.mxu0 %v591
        %618 = vmatprep.subr.mxu0 0.0
        %619 = vmatpush1.msra.mxu0 %v592
        %620 = vmatprep.subr.mxu0 0.0
        %621 = vmatpush1.msra.mxu0 %v593
        %622 = vmatprep.subr.mxu0 0.0
        %623 = vmatpush1.msra.mxu0 %v594
        %624 = vmatprep.subr.mxu0 0.0
        %625 = vmatpush1.msra.mxu0 %v595
        %626 = vmatprep.subr.mxu0 0.0
        %627 = vmatpush1.msra.mxu0 %v596
        %628 = vmatprep.subr.mxu0 0.0
        %629 = vmatpush1.msra.mxu0 %v597
        %630 = vmatprep.subr.mxu0 0.0
        %631 = vmatpush1.msra.mxu0 0.0
        %632 = vmatprep.subr.mxu0 0.0
        %633 = vmatpush1.msra.mxu0 0.0
        %634 = vmatprep.subr.mxu0 0.0
        %635 = vmatpush1.msra.mxu0 0.0
        %636 = vmatprep.subr.mxu0 0.0
        %637 = vmatpush1.msra.mxu0 0.0
        %638 = vmatprep.subr.mxu0 0.0
        %639 = vmatpush1.msra.mxu0 0.0
        %640 = vmatprep.subr.mxu0 0.0
        %641 = vmatpush1.msra.mxu0 0.0
        %642 = vmatprep.subr.mxu0 0.0
        %643 = vmatpush1.msra.mxu0 0.0
        %644 = vmatprep.subr.mxu0 0.0
        %645 = vmatpush1.msra.mxu0 0.0
        %646 = vmatprep.subr.mxu0 0.0
        %647 = vmatpush1.msra.mxu0 0.0
        %648 = vmatprep.subr.mxu0 0.0
        %649 = vmatpush1.msra.mxu0 0.0
        %650 = vmatprep.subr.mxu0 0.0
        %651 = vmatpush1.msra.mxu0 0.0
        %652 = vmatprep.subr.mxu0 0.0
        %653 = vmatpush1.msra.mxu0 0.0
        %654 = vmatprep.subr.mxu0 0.0
        %655 = vmatpush1.msra.mxu0 0.0
        %656 = vmatprep.subr.mxu0 0.0
        %657 = vmatpush1.msra.mxu0 0.0
        %658 = vmatprep.subr.mxu0 0.0
        %659 = vmatpush1.msra.mxu0 0.0
        %660 = vmatprep.subr.mxu0 0.0
        %661 = vmatpush1.msra.mxu0 0.0
        %662 = vmatprep.mubr.f32.mxu0 0.0
        %663 = vmatmul.mubr.f32.gmra.mrb[0].mxu0 %v579
        %v664 = vpop.f32.mrb[0].mxu0
        %v665 = vadd.f32 0.0, %v664
        %v666 = vpop.f32.mrb[0].mxu0
        %667 = vmatprep.mubr.f32.mxu0 0.0
        %668 = vmatmul.mubr.f32.gmra.mrb[0].mxu0 %v580
        %v669 = vpop.f32.mrb[0].mxu0
        %v670 = vadd.f32 0.0, %v669
        %v671 = vpop.f32.mrb[0].mxu0
        %672 = vdwg.mxu0
        %673 = vmatprep.subr.mxu0 0.0
        %674 = vmatpush1.msra.mxu0 %v563
        %675 = vmatprep.subr.mxu0 0.0
        %676 = vmatpush1.msra.mxu0 %v564
        %677 = vmatprep.subr.mxu0 0.0
        %678 = vmatpush1.msra.mxu0 %v565
        %679 = vmatprep.subr.mxu0 0.0
        %680 = vmatpush1.msra.mxu0 %v566
        %681 = vmatprep.subr.mxu0 0.0
        %682 = vmatpush1.msra.mxu0 %v567
        %683 = vmatprep.subr.mxu0 0.0
        %684 = vmatpush1.msra.mxu0 %v568
        %685 = vmatprep.subr.mxu0 0.0
        %686 = vmatpush1.msra.mxu0 %v569
        %687 = vmatprep.subr.mxu0 0.0
        %688 = vmatpush1.msra.mxu0 %v570
        %689 = vmatprep.subr.mxu0 0.0
        %690 = vmatpush1.msra.mxu0 %v571
        %691 = vmatprep.subr.mxu0 0.0
        %692 = vmatpush1.msra.mxu0 %v572
        %693 = vmatprep.subr.mxu0 0.0
        %694 = vmatpush1.msra.mxu0 %v573
        %695 = vmatprep.subr.mxu0 0.0
        %696 = vmatpush1.msra.mxu0 %v574
        %697 = vmatprep.subr.mxu0 0.0
        %698 = vmatpush1.msra.mxu0 %v575
        %699 = vmatprep.subr.mxu0 0.0
        %700 = vmatpush1.msra.mxu0 %v576
        %701 = vmatprep.subr.mxu0 0.0
        %702 = vmatpush1.msra.mxu0 %v577
        %703 = vmatprep.subr.mxu0 0.0
        %704 = vmatpush1.msra.mxu0 %v578
        %705 = vmatprep.subr.mxu0 0.0
        %706 = vmatpush1.msra.mxu0 0.0
        %707 = vmatprep.subr.mxu0 0.0
        %708 = vmatpush1.msra.mxu0 0.0
        %709 = vmatprep.subr.mxu0 0.0
        %710 = vmatpush1.msra.mxu0 0.0
        %711 = vmatprep.subr.mxu0 0.0
        %712 = vmatpush1.msra.mxu0 0.0
        %713 = vmatprep.subr.mxu0 0.0
        %714 = vmatpush1.msra.mxu0 0.0
        %715 = vmatprep.subr.mxu0 0.0
        %716 = vmatpush1.msra.mxu0 0.0
        %717 = vmatprep.subr.mxu0 0.0
        %718 = vmatpush1.msra.mxu0 0.0
        %719 = vmatprep.subr.mxu0 0.0
        %720 = vmatpush1.msra.mxu0 0.0
        %721 = vmatprep.subr.mxu0 0.0
        %722 = vmatpush1.msra.mxu0 0.0
        %723 = vmatprep.subr.mxu0 0.0
        %724 = vmatpush1.msra.mxu0 0.0
        %725 = vmatprep.subr.mxu0 0.0
        %726 = vmatpush1.msra.mxu0 0.0
        %727 = vmatprep.subr.mxu0 0.0
        %728 = vmatpush1.msra.mxu0 0.0
        %729 = vmatprep.subr.mxu0 0.0
        %730 = vmatpush1.msra.mxu0 0.0
        %731 = vmatprep.subr.mxu0 0.0
        %732 = vmatpush1.msra.mxu0 0.0
        %733 = vmatprep.subr.mxu0 0.0
        %734 = vmatpush1.msra.mxu0 0.0
        %735 = vmatprep.subr.mxu0 0.0
        %736 = vmatpush1.msra.mxu0 0.0
        %737 = vmatprep.mubr.f32.mxu0 0.0
        %738 = vmatmul.mubr.f32.gmra.mrb[0].mxu0 %v561
        %v739 = vpop.f32.mrb[0].mxu0
        %v740 = vadd.f32 %v665, %v739
        %v741 = vpop.f32.mrb[0].mxu0
        %742 = vmatprep.mubr.f32.mxu0 0.0
        %743 = vmatmul.mubr.f32.gmra.mrb[0].mxu0 %v562
        %v744 = vpop.f32.mrb[0].mxu0
        %v745 = vadd.f32 %v670, %v744
        %v746 = vpop.f32.mrb[0].mxu0
        %747 = vdwg.mxu0
        %v748 = vld [vmem:[#allocation2 + $0x2] sm:$0xff]
        %v749 = vld [vmem:[#allocation2 + $0xa] sm:$0xff]
        %s750 = scalar_lea.vmem %s3, 256
        %v751 = vld [vmem:[%s750] sm:$0xff]
        %v752 = vld [vmem:[%s750 + $0x8] sm:$0xff]
        %v753 = vld [vmem:[%s750 + $0x10] sm:$0xff]
        %v754 = vld [vmem:[%s750 + $0x18] sm:$0xff]
        %v755 = vld [vmem:[%s750 + $0x20] sm:$0xff]
        %v756 = vld [vmem:[%s750 + $0x28] sm:$0xff]
        %v757 = vld [vmem:[%s750 + $0x30] sm:$0xff]
        %v758 = vld [vmem:[%s750 + $0x38] sm:$0xff]
        %v759 = vld [vmem:[%s750 + $0x40] sm:$0xff]
        %v760 = vld [vmem:[%s750 + $0x48] sm:$0xff]
        %v761 = vld [vmem:[%s750 + $0x50] sm:$0xff]
        %v762 = vld [vmem:[%s750 + $0x58] sm:$0xff]
        %v763 = vld [vmem:[%s750 + $0x60] sm:$0xff]
        %v764 = vld [vmem:[%s750 + $0x68] sm:$0xff]
        %v765 = vld [vmem:[%s750 + $0x70] sm:$0xff]
        %v766 = vld [vmem:[%s750 + $0x78] sm:$0xff]
        %767 = vmatprep.subr.mxu0 0.0
        %768 = vmatpush1.msra.mxu0 %v751
        %769 = vmatprep.subr.mxu0 0.0
        %770 = vmatpush1.msra.mxu0 %v752
        %771 = vmatprep.subr.mxu0 0.0
        %772 = vmatpush1.msra.mxu0 %v753
        %773 = vmatprep.subr.mxu0 0.0
        %774 = vmatpush1.msra.mxu0 %v754
        %775 = vmatprep.subr.mxu0 0.0
        %776 = vmatpush1.msra.mxu0 %v755
        %777 = vmatprep.subr.mxu0 0.0
        %778 = vmatpush1.msra.mxu0 %v756
        %779 = vmatprep.subr.mxu0 0.0
        %780 = vmatpush1.msra.mxu0 %v757
        %781 = vmatprep.subr.mxu0 0.0
        %782 = vmatpush1.msra.mxu0 %v758
        %783 = vmatprep.subr.mxu0 0.0
        %784 = vmatpush1.msra.mxu0 %v759
        %785 = vmatprep.subr.mxu0 0.0
        %786 = vmatpush1.msra.mxu0 %v760
        %787 = vmatprep.subr.mxu0 0.0
        %788 = vmatpush1.msra.mxu0 %v761
        %789 = vmatprep.subr.mxu0 0.0
        %790 = vmatpush1.msra.mxu0 %v762
        %791 = vmatprep.subr.mxu0 0.0
        %792 = vmatpush1.msra.mxu0 %v763
        %793 = vmatprep.subr.mxu0 0.0
        %794 = vmatpush1.msra.mxu0 %v764
        %795 = vmatprep.subr.mxu0 0.0
        %796 = vmatpush1.msra.mxu0 %v765
        %797 = vmatprep.subr.mxu0 0.0
        %798 = vmatpush1.msra.mxu0 %v766
        %799 = vmatprep.subr.mxu0 0.0
        %800 = vmatpush1.msra.mxu0 0.0
        %801 = vmatprep.subr.mxu0 0.0
        %802 = vmatpush1.msra.mxu0 0.0
        %803 = vmatprep.subr.mxu0 0.0
        %804 = vmatpush1.msra.mxu0 0.0
        %805 = vmatprep.subr.mxu0 0.0
        %806 = vmatpush1.msra.mxu0 0.0
        %807 = vmatprep.subr.mxu0 0.0
        %808 = vmatpush1.msra.mxu0 0.0
        %809 = vmatprep.subr.mxu0 0.0
        %810 = vmatpush1.msra.mxu0 0.0
        %811 = vmatprep.subr.mxu0 0.0
        %812 = vmatpush1.msra.mxu0 0.0
        %813 = vmatprep.subr.mxu0 0.0
        %814 = vmatpush1.msra.mxu0 0.0
        %815 = vmatprep.subr.mxu0 0.0
        %816 = vmatpush1.msra.mxu0 0.0
        %817 = vmatprep.subr.mxu0 0.0
        %818 = vmatpush1.msra.mxu0 0.0
        %819 = vmatprep.subr.mxu0 0.0
        %820 = vmatpush1.msra.mxu0 0.0
        %821 = vmatprep.subr.mxu0 0.0
        %822 = vmatpush1.msra.mxu0 0.0
        %823 = vmatprep.subr.mxu0 0.0
        %824 = vmatpush1.msra.mxu0 0.0
        %825 = vmatprep.subr.mxu0 0.0
        %826 = vmatpush1.msra.mxu0 0.0
        %827 = vmatprep.subr.mxu0 0.0
        %828 = vmatpush1.msra.mxu0 0.0
        %829 = vmatprep.subr.mxu0 0.0
        %830 = vmatpush1.msra.mxu0 0.0
        %831 = vmatprep.mubr.f32.mxu0 0.0
        %832 = vmatmul.mubr.f32.gmra.mrb[0].mxu0 %v748
        %v833 = vpop.f32.mrb[0].mxu0
        %v834 = vadd.f32 0.0, %v833
        %v835 = vpop.f32.mrb[0].mxu0
        %836 = vmatprep.mubr.f32.mxu0 0.0
        %837 = vmatmul.mubr.f32.gmra.mrb[0].mxu0 %v749
        %v838 = vpop.f32.mrb[0].mxu0
        %v839 = vadd.f32 0.0, %v838
        %v840 = vpop.f32.mrb[0].mxu0
        %841 = vdwg.mxu0
        %v842 = vadd.f32 %v740, %v834
        %v843 = vadd.f32 %v745, %v839
        %v844 = vld [vmem:[%s4] sm:$0x1]
        %v846 = vlaneseq
        %v847 = vshrl.u32 %v846, 7
        %v848 = vsub.s32 0, %v847
        %v849 = vrot.slane %v844, %v848
        %v851 = vadd.f32 %v842, %v849
        %v852 = vadd.f32 %v843, %v849
        %v853 = vadd.f32 %v851, %v552
        %v854 = vadd.f32 %v852, %v554
        %vm855 = vcmask 523264
        %856 = vst.msk [vmem:[%s217] sm:$0xff] %vm855, %v853
        %857 = vst.msk [vmem:[%s217 + $0x8] sm:$0xff] %vm855, %v854
        %s858 = sand.u32 %s137, 1
        %s859 = scalar_lea.sflag [#allocation4], %s858
        %s860 = sand.u32 %s137, 1
        %s861 = smul.addr %s860, 16
        %s862 = scalar_lea.vmem [#allocation3], %s861
        // Predicated region
        $region41: #{tpu_custom_call.1} parent=39 // pred_check
          %p863 = pneg %p147
        $region42: #{tpu_custom_call.1} parent=39 // pred_check_branch
          %865 = sbr.rel (%p863) target = $region44
        $region43: #{tpu_custom_call.1} parent=39 // pred_region
          %s867 = ssub.s32 256, 256
          %868 = vsyncadd %s859, %s867
          %s869 = smul.addr %s19, 2
          %s870 = smul.addr %s869, 128
          %s871 = scalar_lea.hbm %s5, %s870
          %s872 = sshll.u32 %s862, 4
          %s873 = int_to_ptr.vmem [resolvable:$true] %s872
          %878 = dma.vmem_to_hbm [thread:$0]  %s873, 256, %s871, %s859, 128, 128, 8
        $region44: #{tpu_custom_call.1} parent=39 // pred_fallthru
          _
      $region40: #{tpu_custom_call.1} parent=5 // pred_fallthru
        _
      %p879 = scmp.le.s32.totalorder 2, %s14
      // Predicated region
      $region45: #{tpu_custom_call.1} parent=5 // pred_check
        %p880 = pneg %p879
      $region46: #{tpu_custom_call.1} parent=5 // pred_check_branch
        %882 = sbr.rel (%p880) target = $region48
      $region47: #{tpu_custom_call.1} parent=5 // pred_region
        %s883 = ssub.s32 %s14, 2
        // Predicated region
        $region49: #{tpu_custom_call.1} parent=47 // pred_check
          %p884 = pneg %p153
        $region50: #{tpu_custom_call.1} parent=47 // pred_check_branch
          %886 = sbr.rel (%p884) target = $region52
        $region51: #{tpu_custom_call.1} parent=47 // pred_region
          %s887 = sand.u32 %s138, 1
          %s888 = scalar_lea.sflag [#allocation4], %s887
          %s889 = sand.u32 %s138, 1
          %s890 = smul.addr %s889, 16
          %s891 = scalar_lea.vmem [#allocation3], %s890
          %892 = dma.done %s888, 256
        $region52: #{tpu_custom_call.1} parent=47 // pred_fallthru
          _
      $region48: #{tpu_custom_call.1} parent=5 // pred_fallthru
        _
    $region6: #{tpu_custom_call.1} parent=1 // loop_footer
      %s18 = sadd.s32 1, %s14
    $region7: #{tpu_custom_call.1} parent=1 // loop_footer_branch
      %13 = sbr.rel target = $region3
    $region8: #{tpu_custom_call.1} parent=1 // loop_exit
      _
    %893 = vsyncpa [#allocation4], 1
    %s894 = scalar_lea.sflag [#allocation4], 1
    %895 = vsyncpa %s894, 1

</llo_original>
